<compile_context>
chip_gen: v7x
topology: tpu7x:2x2x1
jax: 0.10.0
libtpu: 0.0.40
codegen_flags: <defaults>
</compile_context>

<pallas_src>
import jax
import jax.numpy as jnp
from jax.experimental import pallas as pl
from jax.experimental.pallas import tpu as pltpu


def mlp_kernel(x_ref, w1_ref, gb_ref, w2_ref, b2_ref, o_ref):
    h_step = pl.program_id(1)

    @pl.when(h_step == 0)
    def _():
        o_ref[...] = jnp.zeros_like(o_ref)

    # ---- Linear 1 (MXU, bf16 operands, f32 accumulation).  Linear1's bias b1
    # cancels exactly inside training-mode BatchNorm and is never added. ----
    h = jnp.dot(x_ref[...], w1_ref[...], preferred_element_type=jnp.float32)  # (B, bh)

    # ---- BatchNorm1d (training mode, biased batch stats), centered variance. ----
    inv_b = 1.0 / h.shape[0]
    mean = jnp.sum(h, axis=0, keepdims=True) * inv_b            # (1, bh)
    d = h - mean
    var = jnp.sum(d * d, axis=0, keepdims=True) * inv_b         # (1, bh)
    gb = gb_ref[...]                                            # (2, bh): gamma, beta
    scale = gb[0:1, :] * jax.lax.rsqrt(var + 1e-5)
    hn = jnp.maximum(d * scale + gb[1:2, :], 0.0)               # normalize + ReLU

    # ---- Linear 2 partial product, accumulated over the innermost H grid axis
    # directly into the resident f32 output block (no extra scratch). ----
    o_ref[...] += jnp.dot(hn.astype(w2_ref.dtype), w2_ref[...],
                          preferred_element_type=jnp.float32)

    @pl.when(h_step == pl.num_programs(1) - 1)
    def _():
        o_ref[...] += b2_ref[...]


def _round_up(n, m):
    return -(-n // m) * m


def _pad2(a, shape):
    pads = [(0, t - s) for s, t in zip(a.shape, shape)]
    return jnp.pad(a, pads) if any(p for _, p in pads) else a


def _vmem_limit_bytes():
    # Per-generation scoped-VMEM limit: ~75% of physical capacity
    # (~48 MiB on v7x, ~96 MiB on v5e/v6e).
    try:
        cap = getattr(pltpu.get_tpu_info(), "vmem_capacity_bytes", 64 * 1024 * 1024)
    except Exception:
        cap = 64 * 1024 * 1024
    return int(cap) * 3 // 4


def _estimate_vmem_bytes(B, in_p, bh, bp):
    bf16, f32 = 2, 4
    x_b = B * in_p * bf16                # resident full-batch activations
    w1_b = 2 * in_p * bh * bf16          # double-buffered W1 H-tile
    gb_b = 2 * 2 * bh * f32              # double-buffered fused gamma/beta tile
    w2_b = 2 * bh * bp * bf16            # double-buffered W2 tile
    b2_b = 2 * bp * f32
    out_b = B * bp * f32                 # resident output/accumulator block
    tmp_b = 3 * B * bh * f32             # h, centered h, bf16-cast temporaries
    return x_b + w1_b + gb_b + w2_b + b2_b + out_b + tmp_b


def mlp_forward(x, w1, b1, gamma, beta, w2, b2, *, block_h=512, block_p=512,
                matmul_dtype=jnp.bfloat16):
    """x: (B, in_dim); w1: (in_dim, hid); w2: (hid, proj) (transposed vs torch)."""
    B, in_dim = x.shape
    hid = w1.shape[1]
    proj = w2.shape[1]

    in_p = _round_up(in_dim, 128)
    vmem_limit = _vmem_limit_bytes()

    # proj tile: multiple of 128.  Wide proj splits into several tiles that form
    # the outer "parallel" grid axis (keeps the second v7x TensorCore busy).
    bp = max(128, min(_round_up(proj, 128), (block_p // 128) * 128))
    # hidden tile: largest multiple of 128 <= block_h fitting the VMEM budget.
    bh = max(128, min(_round_up(hid, 128), (block_h // 128) * 128))
    while bh > 128 and _estimate_vmem_bytes(B, in_p, bh, bp) > vmem_limit:
        bh -= 128
    while bp > 128 and _estimate_vmem_bytes(B, in_p, bh, bp) > vmem_limit:
        bp -= 128

    hid_p = _round_up(hid, bh)    # pad UP to the tile; padded cols/rows are zero
    proj_p = _round_up(proj, bp)
    n_h = hid_p // bh
    n_p = proj_p // bp

    x_p = _pad2(x, (B, in_p)).astype(matmul_dtype)
    w1_p = _pad2(w1, (in_p, hid_p)).astype(matmul_dtype)
    w2_p = _pad2(w2, (hid_p, proj_p)).astype(matmul_dtype)
    gb_p = _pad2(jnp.stack([gamma, beta]).astype(jnp.float32), (2, hid_p))
    b2_p = _pad2(b2.reshape(1, proj).astype(jnp.float32), (1, proj_p))
    del b1  # cancels exactly inside training-mode BatchNorm

    mm_bytes = jnp.dtype(matmul_dtype).itemsize
    bytes_accessed = (x_p.size + n_p * w1_p.size + w2_p.size) * mm_bytes \
        + (n_p * gb_p.size + b2_p.size) * 4 + B * proj_p * 4

    # NOTE: if xprof shows exposed W1/W2 DMA at small B, add
    # pipeline_mode=pl.Buffered(3) to the W1/W2 specs (budget the extra buffer).
    out = pl.pallas_call(
        mlp_kernel,
        out_shape=jax.ShapeDtypeStruct((B, proj_p), jnp.float32),
        grid_spec=pltpu.PrefetchScalarGridSpec(
            num_scalar_prefetch=0,
            grid=(n_p, n_h),                                    # (parallel, reduction)
            in_specs=[
                pl.BlockSpec((B, in_p), lambda p, h: (0, 0)),   # x (resident)
                pl.BlockSpec((in_p, bh), lambda p, h: (0, h)),  # W1 H-tile
                pl.BlockSpec((2, bh), lambda p, h: (0, h)),     # fused gamma/beta
                pl.BlockSpec((bh, bp), lambda p, h: (h, p)),    # W2 tile
                pl.BlockSpec((1, bp), lambda p, h: (0, p)),     # b2 proj-tile
            ],
            out_specs=pl.BlockSpec((B, bp), lambda p, h: (0, p)),
        ),
        compiler_params=pltpu.CompilerParams(
            dimension_semantics=("parallel", "arbitrary"),
            vmem_limit_bytes=vmem_limit,
        ),
        cost_estimate=pl.CostEstimate(
            flops=2 * B * in_p * hid_p * n_p + 2 * B * hid_p * proj_p,
            transcendentals=hid_p * n_p,
            bytes_accessed=int(bytes_accessed),
        ),
    )(x_p, w1_p, gb_p, w2_p, b2_p)

    return out[:, :proj].astype(x.dtype)


def init_params(key, in_dim, hid, proj):
    # Deterministic init mimicking nn.Linear's uniform(-1/sqrt(fan_in), 1/sqrt(fan_in)).
    k1, k2, k3, k4 = jax.random.split(key, 4)
    lim1 = 1.0 / jnp.sqrt(in_dim)
    lim2 = 1.0 / jnp.sqrt(hid)
    w1 = jax.random.uniform(k1, (in_dim, hid), jnp.float32, -lim1, lim1)
    b1 = jax.random.uniform(k2, (hid,), jnp.float32, -lim1, lim1)
    w2 = jax.random.uniform(k3, (hid, proj), jnp.float32, -lim2, lim2)
    b2 = jax.random.uniform(k4, (proj,), jnp.float32, -lim2, lim2)
    gamma = jnp.ones((hid,), jnp.float32)   # BatchNorm1d weight
    beta = jnp.zeros((hid,), jnp.float32)   # BatchNorm1d bias
    return w1, b1, gamma, beta, w2, b2


def _reference(x, w1, b1, gamma, beta, w2, b2):
    # Pure-JAX reference with matching bf16 matmul-input casts (BN/ReLU in f32).
    dt = jnp.bfloat16
    h = jnp.dot(x.astype(dt), w1.astype(dt), preferred_element_type=jnp.float32) + b1
    mu = h.mean(0, keepdims=True)
    var = ((h - mu) ** 2).mean(0, keepdims=True)
    hr = jnp.maximum((h - mu) * jax.lax.rsqrt(var + 1e-5) * gamma + beta, 0.0)
    return jnp.dot(hr.astype(dt), w2.astype(dt), preferred_element_type=jnp.float32) + b2


if __name__ == "__main__":
    key = jax.random.PRNGKey(0)

    # Case 1: default tiling, awkward (non-128) feature dims -> exercises padding.
    B, IN_DIM, HID, PROJ = 16, 48, 160, 24
    kx, kp = jax.random.split(key)
    x = jax.random.normal(kx, (B, IN_DIM), jnp.float32)
    params = init_params(kp, IN_DIM, HID, PROJ)
    out = mlp_forward(x, *params)
    jax.block_until_ready(out)
    assert out.shape == (B, PROJ)
    ref = _reference(x, *params)
    assert jnp.allclose(out, ref, atol=2e-2, rtol=2e-2), "case 1 mismatch"

    # Case 2: small explicit tiles -> 3-step H reduction (hid 320 -> padded 384)
    # and a 2-wide parallel proj axis (proj 200 -> padded 256).
    B2, IN2, HID2, PROJ2 = 8, 96, 320, 200
    kx2, kp2 = jax.random.split(kp)
    x2 = jax.random.normal(kx2, (B2, IN2), jnp.float32)
    params2 = init_params(kp2, IN2, HID2, PROJ2)
    out2 = mlp_forward(x2, *params2, block_h=128, block_p=128)
    jax.block_until_ready(out2)
    assert out2.shape == (B2, PROJ2)
    ref2 = _reference(x2, *params2)
    assert jnp.allclose(out2, ref2, atol=2e-2, rtol=2e-2), "case 2 mismatch"

    print("KERNEL_OK")
</pallas_src>

<mosaic_0001>
module attributes {stable_mosaic.version = 11 : i64} {
  func.func @mlp_kernel(%arg0: i32, %arg1: i32, %arg2: memref<16x128xbf16, #tpu.memory_space<vmem>>, %arg3: memref<128x256xbf16, #tpu.memory_space<vmem>>, %arg4: memref<2x256xf32, #tpu.memory_space<vmem>>, %arg5: memref<256x128xbf16, #tpu.memory_space<vmem>>, %arg6: memref<1x128xf32, #tpu.memory_space<vmem>>, %arg7: memref<16x128xf32, #tpu.memory_space<vmem>>) attributes {dimension_semantics = [#tpu.dimension_semantics<parallel>, #tpu.dimension_semantics<arbitrary>], iteration_bounds = array<i64: 1, 1>, scalar_prefetch = 0 : i64, scratch_operands = 0 : i64, tpu.core_type = #tpu.core_type<tc>, window_params = [{pipeline_mode = #tpu.pipeline_mode<synchronous>, transform_indices = @transform_0, window_bounds = array<i64: 16, 128>}, {transform_indices = @transform_1, window_bounds = array<i64: 128, 256>}, {transform_indices = @transform_2, window_bounds = array<i64: 2, 256>}, {transform_indices = @transform_3, window_bounds = array<i64: 256, 128>}, {transform_indices = @transform_4, window_bounds = array<i64: 1, 128>}, {transform_indices = @transform_5, window_bounds = array<i64: 16, 128>}]} {
    %c0_i32 = arith.constant 0 : i32
    %0 = arith.cmpi eq, %arg1, %c0_i32 : i32
    %1 = arith.extui %0 : i1 to i32
    %c0_i32_0 = arith.constant 0 : i32
    %2 = arith.cmpi ne, %1, %c0_i32_0 : i32
    scf.if %2 {
      %cst_21 = arith.constant 0.000000e+00 : f32
      %39 = vector.broadcast %cst_21 : f32 to vector<16x128xf32>
      %c0_22 = arith.constant 0 : index
      %c0_23 = arith.constant 0 : index
      %40 = vector.load %arg7[%c0_22, %c0_23] : memref<16x128xf32, #tpu.memory_space<vmem>>, vector<16x128xf32>
      tpu.vector_store %arg7[%c0_22, %c0_23], %39 {strides = array<i32>} : memref<16x128xf32, #tpu.memory_space<vmem>>, vector<16x128xf32>,
    } else {
    }
    %c0 = arith.constant 0 : index
    %c0_1 = arith.constant 0 : index
    %3 = vector.load %arg2[%c0, %c0_1] : memref<16x128xbf16, #tpu.memory_space<vmem>>, vector<16x128xbf16>
    %c0_2 = arith.constant 0 : index
    %c0_3 = arith.constant 0 : index
    %4 = vector.load %arg3[%c0_2, %c0_3] : memref<128x256xbf16, #tpu.memory_space<vmem>>, vector<128x256xbf16>
    %cst = arith.constant dense<0.000000e+00> : vector<16x256xf32>
    %5 = tpu.matmul %3, %4, %cst {dimension_numbers = #tpu.dot_dimension_numbers<[1], [0], [0], [1], [0, 0, 1, 1], [], []>} : vector<16x128xbf16>, vector<128x256xbf16>, vector<16x256xf32> -> vector<16x256xf32>
    %cst_4 = arith.constant dense<0.000000e+00> : vector<256xf32>
    %6 = vector.multi_reduction <add>, %5, %cst_4 [0] : vector<16x256xf32> to vector<256xf32>
    %7 = vector.shape_cast %6 : vector<256xf32> to vector<1x256xf32>
    %cst_5 = arith.constant 6.250000e-02 : f32
    %8 = vector.broadcast %cst_5 : f32 to vector<1x256xf32>
    %9 = arith.mulf %7, %8 : vector<1x256xf32>
    %10 = vector.broadcast %9 : vector<1x256xf32> to vector<16x256xf32>
    %11 = arith.subf %5, %10 : vector<16x256xf32>
    %12 = arith.mulf %11, %11 : vector<16x256xf32>
    %cst_6 = arith.constant dense<0.000000e+00> : vector<256xf32>
    %13 = vector.multi_reduction <add>, %12, %cst_6 [0] : vector<16x256xf32> to vector<256xf32>
    %14 = vector.shape_cast %13 : vector<256xf32> to vector<1x256xf32>
    %cst_7 = arith.constant 6.250000e-02 : f32
    %15 = vector.broadcast %cst_7 : f32 to vector<1x256xf32>
    %16 = arith.mulf %14, %15 : vector<1x256xf32>
    %c0_8 = arith.constant 0 : index
    %c0_9 = arith.constant 0 : index
    %17 = vector.load %arg4[%c0_8, %c0_9] : memref<2x256xf32, #tpu.memory_space<vmem>>, vector<2x256xf32>
    %18 = vector.extract_strided_slice %17 {offsets = [0, 0], sizes = [1, 256], strides = [1, 1]} : vector<2x256xf32> to vector<1x256xf32>
    %cst_10 = arith.constant 9.99999974E-6 : f32
    %19 = vector.broadcast %cst_10 : f32 to vector<1x256xf32>
    %20 = arith.addf %16, %19 : vector<1x256xf32>
    %21 = math.rsqrt %20 : vector<1x256xf32>
    %22 = arith.mulf %18, %21 : vector<1x256xf32>
    %23 = vector.broadcast %22 : vector<1x256xf32> to vector<16x256xf32>
    %24 = arith.mulf %11, %23 : vector<16x256xf32>
    %25 = vector.extract_strided_slice %17 {offsets = [1, 0], sizes = [1, 256], strides = [1, 1]} : vector<2x256xf32> to vector<1x256xf32>
    %26 = vector.broadcast %25 : vector<1x256xf32> to vector<16x256xf32>
    %27 = arith.addf %24, %26 : vector<16x256xf32>
    %cst_11 = arith.constant 0.000000e+00 : f32
    %28 = vector.broadcast %cst_11 : f32 to vector<16x256xf32>
    %29 = arith.maximumf %27, %28 : vector<16x256xf32>
    %c0_12 = arith.constant 0 : index
    %c0_13 = arith.constant 0 : index
    %30 = vector.load %arg7[%c0_12, %c0_13] : memref<16x128xf32, #tpu.memory_space<vmem>>, vector<16x128xf32>
    %31 = arith.truncf %29 : vector<16x256xf32> to vector<16x256xbf16>
    %c0_14 = arith.constant 0 : index
    %c0_15 = arith.constant 0 : index
    %32 = vector.load %arg5[%c0_14, %c0_15] : memref<256x128xbf16, #tpu.memory_space<vmem>>, vector<256x128xbf16>
    %cst_16 = arith.constant dense<0.000000e+00> : vector<16x128xf32>
    %33 = tpu.matmul %31, %32, %cst_16 {dimension_numbers = #tpu.dot_dimension_numbers<[1], [0], [0], [1], [0, 0, 1, 1], [], []>} : vector<16x256xbf16>, vector<256x128xbf16>, vector<16x128xf32> -> vector<16x128xf32>
    %34 = arith.addf %30, %33 : vector<16x128xf32>
    %c0_17 = arith.constant 0 : index
    %c0_18 = arith.constant 0 : index
    %35 = vector.load %arg7[%c0_17, %c0_18] : memref<16x128xf32, #tpu.memory_space<vmem>>, vector<16x128xf32>
    tpu.vector_store %arg7[%c0_17, %c0_18], %34 {strides = array<i32>} : memref<16x128xf32, #tpu.memory_space<vmem>>, vector<16x128xf32>,
    %c0_i32_19 = arith.constant 0 : i32
    %36 = arith.cmpi eq, %arg1, %c0_i32_19 : i32
    %37 = arith.extui %36 : i1 to i32
    %c0_i32_20 = arith.constant 0 : i32
    %38 = arith.cmpi ne, %37, %c0_i32_20 : i32
    scf.if %38 {
      %c0_21 = arith.constant 0 : index
      %c0_22 = arith.constant 0 : index
      %39 = vector.load %arg7[%c0_21, %c0_22] : memref<16x128xf32, #tpu.memory_space<vmem>>, vector<16x128xf32>
      %c0_23 = arith.constant 0 : index
      %c0_24 = arith.constant 0 : index
      %40 = vector.load %arg6[%c0_23, %c0_24] : memref<1x128xf32, #tpu.memory_space<vmem>>, vector<1x128xf32>
      %41 = vector.broadcast %40 : vector<1x128xf32> to vector<16x128xf32>
      %42 = arith.addf %39, %41 : vector<16x128xf32>
      %c0_25 = arith.constant 0 : index
      %c0_26 = arith.constant 0 : index
      %43 = vector.load %arg7[%c0_25, %c0_26] : memref<16x128xf32, #tpu.memory_space<vmem>>, vector<16x128xf32>
      tpu.vector_store %arg7[%c0_25, %c0_26], %42 {strides = array<i32>} : memref<16x128xf32, #tpu.memory_space<vmem>>, vector<16x128xf32>,
    } else {
    }
    return
  }
  func.func @transform_0(%arg0: i32, %arg1: i32) -> (i32, i32) {
    %c0_i32 = arith.constant 0 : i32
    %c0_i32_0 = arith.constant 0 : i32
    %c0_i32_1 = arith.constant 0 : i32
    return %c0_i32, %c0_i32_0 : i32, i32
  }
  func.func @transform_1(%arg0: i32, %arg1: i32) -> (i32, i32) {
    %c0_i32 = arith.constant 0 : i32
    %c0_i32_0 = arith.constant 0 : i32
    return %c0_i32, %arg1 : i32, i32
  }
  func.func @transform_2(%arg0: i32, %arg1: i32) -> (i32, i32) {
    %c0_i32 = arith.constant 0 : i32
    %c0_i32_0 = arith.constant 0 : i32
    return %c0_i32, %arg1 : i32, i32
  }
  func.func @transform_3(%arg0: i32, %arg1: i32) -> (i32, i32) {
    %c0_i32 = arith.constant 0 : i32
    return %arg1, %arg0 : i32, i32
  }
  func.func @transform_4(%arg0: i32, %arg1: i32) -> (i32, i32) {
    %c0_i32 = arith.constant 0 : i32
    %c0_i32_0 = arith.constant 0 : i32
    return %c0_i32, %arg0 : i32, i32
  }
  func.func @transform_5(%arg0: i32, %arg1: i32) -> (i32, i32) {
    %c0_i32 = arith.constant 0 : i32
    %c0_i32_0 = arith.constant 0 : i32
    return %c0_i32, %arg0 : i32, i32
  }
}

</mosaic_0001>

<llo_original>
// kernel: tpu_custom_call.1
$region0: #{tpu_custom_call.1}
  #allocation0 [shape = 'u32[]', space=smem, size = 0x4, offset = 0x4, fixed_abs, tag = 'smem constant byte address 0x4 - core index']
  #allocation1 [shape = 'u32[144,128]{1,0:T(1,128)}', space=vmem, size = 0x12000, scoped, tag = 'internal scratch']
  %s0 = inlined_call_operand.hbm [shape: bf16[16,128], index: 0, kind: input, shape index: {}]
  %s1 = inlined_call_operand.hbm [shape: bf16[128,256], index: 1, kind: input, shape index: {}]
  %s2 = inlined_call_operand.vmem [shape: f32[2,256], index: 2, kind: input, shape index: {}]
  %s3 = inlined_call_operand.hbm [shape: bf16[256,128], index: 3, kind: input, shape index: {}]
  %s4 = inlined_call_operand.vmem [shape: f32[1,128], index: 4, kind: input, shape index: {}]
  %s5 = inlined_call_operand.hbm [shape: f32[16,128], index: 5, kind: output, shape index: {}]
  %s6 = sld [smem:[#allocation0]]
  $region50: #{tpu_custom_call.1} parent=0
    _
  %s8 = ssub.s32 1, %s6
  %s9 = scalar_select 0, %s8, %s6
  $region1: #{tpu_custom_call.1} parent=0
    #allocation2 [shape = 'u8[4096]{0}', space=vmem, size = 0x1000, scoped, tag = 'input window, operand 0, single buffered']
    #allocation3 [shape = 's32[1]{0}', space=sflag, size = 0x4, scoped, tag = 'scoped memory for tpu_custom_call.1']
    #allocation4 [shape = 's32[1]{0}', space=sflag, size = 0x4, scoped, tag = 'scoped memory for tpu_custom_call.1']
    #allocation5 [shape = 'u8[65536]{0}', space=vmem, size = 0x10000, scoped, tag = 'input window, operand 1, single buffered']
    #allocation6 [shape = 's32[1]{0}', space=sflag, size = 0x4, scoped, tag = 'scoped memory for tpu_custom_call.1']
    #allocation7 [shape = 'u8[65536]{0}', space=vmem, size = 0x10000, scoped, tag = 'input window, operand 3, single buffered']
    #allocation8 [shape = 'u8[8192]{0}', space=vmem, size = 0x2000, scoped, tag = 'output window, operand 0, single buffered']
    %10 = vsyncpa [#allocation3], 0
    %11 = vsyncpa [#allocation6], 0
    %12 = vsyncpa [#allocation4], 0
    // Predicated region
    $region2: #{tpu_custom_call.1} parent=1 // pred_check
      _
    $region3: #{tpu_custom_call.1} parent=1 // pred_check_branch
      %14 = sbr.rel (0) target = $region5
    $region4: #{tpu_custom_call.1} parent=1 // pred_region
      %s16 = ssub.s32 128, 128
      %17 = vsyncadd [#allocation3], %s16
      %s18 = sshll.u32 [#allocation2], 4
      %s19 = int_to_ptr.vmem [resolvable:$true] %s18
      %24 = dma.hbm_to_vmem [thread:$0]  %s0, 128, %s19, [#allocation3], 64, 64, 4
    $region5: #{tpu_custom_call.1} parent=1 // pred_fallthru
      _
    // Predicated region
    $region6: #{tpu_custom_call.1} parent=1 // pred_check
      _
    $region7: #{tpu_custom_call.1} parent=1 // pred_check_branch
      %26 = sbr.rel (0) target = $region9
    $region8: #{tpu_custom_call.1} parent=1 // pred_region
      %s28 = ssub.s32 2048, 2048
      %29 = vsyncadd [#allocation6], %s28
      %s30 = sshll.u32 [#allocation5], 4
      %s31 = int_to_ptr.vmem [resolvable:$true] %s30
      %36 = dma.hbm_to_vmem [thread:$0]  %s1, 2048, %s31, [#allocation6], 128, 128, 8
    $region9: #{tpu_custom_call.1} parent=1 // pred_fallthru
      _
    // Predicated region
    $region10: #{tpu_custom_call.1} parent=1 // pred_check
      _
    $region11: #{tpu_custom_call.1} parent=1 // pred_check_branch
      %38 = sbr.rel (0) target = $region13
    $region12: #{tpu_custom_call.1} parent=1 // pred_region
      _
    $region13: #{tpu_custom_call.1} parent=1 // pred_fallthru
      _
    // Predicated region
    $region14: #{tpu_custom_call.1} parent=1 // pred_check
      _
    $region15: #{tpu_custom_call.1} parent=1 // pred_check_branch
      %40 = sbr.rel (0) target = $region17
    $region16: #{tpu_custom_call.1} parent=1 // pred_region
      %s42 = ssub.s32 2048, 2048
      %43 = vsyncadd [#allocation6], %s42
      %s44 = sshll.u32 [#allocation7], 4
      %s45 = int_to_ptr.vmem [resolvable:$true] %s44
      %50 = dma.hbm_to_vmem [thread:$0]  %s3, 2048, %s45, [#allocation6], 64, 64, 4
    $region17: #{tpu_custom_call.1} parent=1 // pred_fallthru
      _
    // Predicated region
    $region18: #{tpu_custom_call.1} parent=1 // pred_check
      _
    $region19: #{tpu_custom_call.1} parent=1 // pred_check_branch
      %52 = sbr.rel (0) target = $region21
    $region20: #{tpu_custom_call.1} parent=1 // pred_region
      _
    $region21: #{tpu_custom_call.1} parent=1 // pred_fallthru
      _
    // Predicated region
    $region22: #{tpu_custom_call.1} parent=1 // pred_check
      _
    $region23: #{tpu_custom_call.1} parent=1 // pred_check_branch
      %54 = sbr.rel (0) target = $region25
    $region24: #{tpu_custom_call.1} parent=1 // pred_region
      %55 = dma.done [#allocation3], 128
    $region25: #{tpu_custom_call.1} parent=1 // pred_fallthru
      _
    // Predicated region
    $region26: #{tpu_custom_call.1} parent=1 // pred_check
      _
    $region27: #{tpu_custom_call.1} parent=1 // pred_check_branch
      %57 = sbr.rel (0) target = $region29
    $region28: #{tpu_custom_call.1} parent=1 // pred_region
      %58 = dma.done [#allocation6], 2048
    $region29: #{tpu_custom_call.1} parent=1 // pred_fallthru
      _
    // Predicated region
    $region30: #{tpu_custom_call.1} parent=1 // pred_check
      _
    $region31: #{tpu_custom_call.1} parent=1 // pred_check_branch
      %60 = sbr.rel (0) target = $region33
    $region32: #{tpu_custom_call.1} parent=1 // pred_region
      %61 = dma.done [#allocation6], 2048
    $region33: #{tpu_custom_call.1} parent=1 // pred_fallthru
      _
    %p63 = scmp.eq.s32.totalorder 0, 0
    // Predicated region
    $region34: #{tpu_custom_call.1} parent=1 // pred_check
      %p64 = pneg %p63
    $region35: #{tpu_custom_call.1} parent=1 // pred_check_branch
      %66 = sbr.rel (%p64) target = $region37
    $region36: #{tpu_custom_call.1} parent=1 // pred_region
      %67 = vst [vmem:[#allocation8] sm:$0xff] 0.0
      %68 = vst [vmem:[#allocation8 + $0x8] sm:$0xff] 0.0
    $region37: #{tpu_custom_call.1} parent=1 // pred_fallthru
      _
    %v69 = vld [vmem:[#allocation2] sm:$0xf]
    %v70 = vld [vmem:[#allocation2 + $0x4] sm:$0xf]
    %v71 = vld [vmem:[#allocation5] sm:$0xff]
    %v72 = vld [vmem:[#allocation5 + $0x8] sm:$0xff]
    %v73 = vld [vmem:[#allocation5 + $0x10] sm:$0xff]
    %v74 = vld [vmem:[#allocation5 + $0x18] sm:$0xff]
    %v75 = vld [vmem:[#allocation5 + $0x20] sm:$0xff]
    %v76 = vld [vmem:[#allocation5 + $0x28] sm:$0xff]
    %v77 = vld [vmem:[#allocation5 + $0x30] sm:$0xff]
    %v78 = vld [vmem:[#allocation5 + $0x38] sm:$0xff]
    %v79 = vld [vmem:[#allocation5 + $0x40] sm:$0xff]
    %v80 = vld [vmem:[#allocation5 + $0x48] sm:$0xff]
    %v81 = vld [vmem:[#allocation5 + $0x50] sm:$0xff]
    %v82 = vld [vmem:[#allocation5 + $0x58] sm:$0xff]
    %v83 = vld [vmem:[#allocation5 + $0x60] sm:$0xff]
    %v84 = vld [vmem:[#allocation5 + $0x68] sm:$0xff]
    %v85 = vld [vmem:[#allocation5 + $0x70] sm:$0xff]
    %v86 = vld [vmem:[#allocation5 + $0x78] sm:$0xff]
    %v89 = vunpack.c.l.b16 %v69
    %v90 = vunpack.c.l.b16 %v70
    %v91 = vpack.c.b16 %v90, %v89
    %v109 = vunpack.c.l.b16 %v71
    %v110 = vunpack.c.h.b16 %v71
    %v111 = vunpack.c.l.b16 %v72
    %v112 = vunpack.c.h.b16 %v72
    %v113 = vunpack.c.l.b16 %v73
    %v114 = vunpack.c.h.b16 %v73
    %v115 = vunpack.c.l.b16 %v74
    %v116 = vunpack.c.h.b16 %v74
    %v117 = vunpack.c.l.b16 %v75
    %v118 = vunpack.c.h.b16 %v75
    %v119 = vunpack.c.l.b16 %v76
    %v120 = vunpack.c.h.b16 %v76
    %v121 = vunpack.c.l.b16 %v77
    %v122 = vunpack.c.h.b16 %v77
    %v123 = vunpack.c.l.b16 %v78
    %v124 = vunpack.c.h.b16 %v78
    %v125 = vunpack.c.l.b16 %v79
    %v126 = vunpack.c.h.b16 %v79
    %v127 = vunpack.c.l.b16 %v80
    %v128 = vunpack.c.h.b16 %v80
    %v129 = vunpack.c.l.b16 %v81
    %v130 = vunpack.c.h.b16 %v81
    %v131 = vunpack.c.l.b16 %v82
    %v132 = vunpack.c.h.b16 %v82
    %v133 = vunpack.c.l.b16 %v83
    %v134 = vunpack.c.h.b16 %v83
    %v135 = vunpack.c.l.b16 %v84
    %v136 = vunpack.c.h.b16 %v84
    %v137 = vunpack.c.l.b16 %v85
    %v138 = vunpack.c.h.b16 %v85
    %v139 = vunpack.c.l.b16 %v86
    %v140 = vunpack.c.h.b16 %v86
    %v141 = vpack.c.b16 %v111, %v109
    %v142 = vpack.c.b16 %v112, %v110
    %v143 = vpack.c.b16 %v115, %v113
    %v144 = vpack.c.b16 %v116, %v114
    %v145 = vpack.c.b16 %v119, %v117
    %v146 = vpack.c.b16 %v120, %v118
    %v147 = vpack.c.b16 %v123, %v121
    %v148 = vpack.c.b16 %v124, %v122
    %v149 = vpack.c.b16 %v127, %v125
    %v150 = vpack.c.b16 %v128, %v126
    %v151 = vpack.c.b16 %v131, %v129
    %v152 = vpack.c.b16 %v132, %v130
    %v153 = vpack.c.b16 %v135, %v133
    %v154 = vpack.c.b16 %v136, %v134
    %v155 = vpack.c.b16 %v139, %v137
    %v156 = vpack.c.b16 %v140, %v138
    %173 = vmatprep.subr.bf16.mxu0 %v142
    %174 = vmatpush1.bf16.msra.mxu0 %v141
    %175 = vmatprep.subr.bf16.mxu0 %v144
    %176 = vmatpush1.bf16.msra.mxu0 %v143
    %177 = vmatprep.subr.bf16.mxu0 %v146
    %178 = vmatpush1.bf16.msra.mxu0 %v145
    %179 = vmatprep.subr.bf16.mxu0 %v148
    %180 = vmatpush1.bf16.msra.mxu0 %v147
    %181 = vmatprep.subr.bf16.mxu0 %v150
    %182 = vmatpush1.bf16.msra.mxu0 %v149
    %183 = vmatprep.subr.bf16.mxu0 %v152
    %184 = vmatpush1.bf16.msra.mxu0 %v151
    %185 = vmatprep.subr.bf16.mxu0 %v154
    %186 = vmatpush1.bf16.msra.mxu0 %v153
    %187 = vmatprep.subr.bf16.mxu0 %v156
    %188 = vmatpush1.bf16.msra.mxu0 %v155
    %189 = vmatprep.subr.bf16.mxu0 0
    %190 = vmatpush1.bf16.msra.mxu0 0
    %191 = vmatprep.subr.bf16.mxu0 0
    %192 = vmatpush1.bf16.msra.mxu0 0
    %193 = vmatprep.subr.bf16.mxu0 0
    %194 = vmatpush1.bf16.msra.mxu0 0
    %195 = vmatprep.subr.bf16.mxu0 0
    %196 = vmatpush1.bf16.msra.mxu0 0
    %197 = vmatprep.subr.bf16.mxu0 0
    %198 = vmatpush1.bf16.msra.mxu0 0
    %199 = vmatprep.subr.bf16.mxu0 0
    %200 = vmatpush1.bf16.msra.mxu0 0
    %201 = vmatprep.subr.bf16.mxu0 0
    %202 = vmatpush1.bf16.msra.mxu0 0
    %203 = vmatprep.subr.bf16.mxu0 0
    %204 = vmatpush1.bf16.msra.mxu0 0
    %205 = vmatprep.mubr.bf16.mxu0 0
    %206 = vmatmul.mubr.bf16.gmra.mrb[0].mxu0 %v91
    %v207 = vpop.f32.mrb[0].mxu0
    %v208 = vadd.f32 0.0, %v207
    %v209 = vpop.f32.mrb[0].mxu0
    %v210 = vadd.f32 0.0, %v209
    %v211 = vpop.f32.mrb[0].mxu0
    %v212 = vadd.f32 0.0, %v211
    %v213 = vpop.f32.mrb[0].mxu0
    %v214 = vadd.f32 0.0, %v213
    %215 = vdwg.mxu0
    %v216 = vadd.f32 %v208, %v212
    %v217 = vrot.slane %v216, 4
    %v218 = vadd.f32 %v216, %v217
    %v219 = vrot.slane %v218, 2
    %v220 = vadd.f32 %v218, %v219
    %v221 = vrot.slane %v220, 1
    %v222 = vadd.f32 %v220, %v221
    %v223 = vadd.f32 %v210, %v214
    %v224 = vrot.slane %v223, 4
    %v225 = vadd.f32 %v223, %v224
    %v226 = vrot.slane %v225, 2
    %v227 = vadd.f32 %v225, %v226
    %v228 = vrot.slane %v227, 1
    %v229 = vadd.f32 %v227, %v228
    %v230 = vmul.f32 %v222, 0.0625
    %v231 = vmul.f32 %v229, 0.0625
    %v232 = vsub.f32 %v208, %v230
    %v233 = vsub.f32 %v210, %v231
    %v234 = vsub.f32 %v212, %v230
    %v235 = vsub.f32 %v214, %v231
    %v236 = vmul.f32 %v232, %v232
    %v237 = vmul.f32 %v233, %v233
    %v238 = vmul.f32 %v234, %v234
    %v239 = vmul.f32 %v235, %v235
    %v240 = vadd.f32 %v236, %v238
    %v241 = vrot.slane %v240, 4
    %v242 = vadd.f32 %v240, %v241
    %v243 = vrot.slane %v242, 2
    %v244 = vadd.f32 %v242, %v243
    %v245 = vrot.slane %v244, 1
    %v246 = vadd.f32 %v244, %v245
    %v247 = vadd.f32 %v237, %v239
    %v248 = vrot.slane %v247, 4
    %v249 = vadd.f32 %v247, %v248
    %v250 = vrot.slane %v249, 2
    %v251 = vadd.f32 %v249, %v250
    %v252 = vrot.slane %v251, 1
    %v253 = vadd.f32 %v251, %v252
    %v254 = vmul.f32 %v246, 0.0625
    %v255 = vmul.f32 %v253, 0.0625
    %v256 = vld [vmem:[%s2] sm:$0xf]
    %v257 = vadd.f32 %v254, 1e-05
    %v258 = vadd.f32 %v255, 1e-05
    %v259 = vrsqrt.pop %v257
    %v260 = vrsqrt.pop %v258
    %v263 = vcombine.low %v259, %v260
    %v265 = vunpack.c.l.s4 1983009808
    %v266 = vunpack.c.0.s8 %v265
    %v267 = vlaneseq
    %v268 = vshrl.u32 %v267, 7
    %v269 = vsub.s32 %v266, %v268
    %v270 = vrot.slane %v263, %v269
    %v272 = vmul.f32 %v256, %v270
    %v274 = vlaneseq
    %v275 = vshrl.u32 %v274, 7
    %v276 = vsub.s32 0, %v275
    %v277 = vrot.slane %v272, %v276
    %v278 = vlaneseq
    %v279 = vshrl.u32 %v278, 7
    %v280 = vsub.s32 2, %v279
    %v281 = vrot.slane %v272, %v280
    %v284 = vlaneseq
    %v285 = vshrl.u32 %v284, 7
    %v286 = vsub.s32 0, %v285
    %v287 = vrot.slane %v277, %v286
    %v288 = vlaneseq
    %v289 = vshrl.u32 %v288, 7
    %v290 = vsub.s32 0, %v289
    %v291 = vrot.slane %v281, %v290
    %v292 = vmul.f32 %v232, %v287
    %v293 = vmul.f32 %v233, %v291
    %v294 = vmul.f32 %v234, %v287
    %v295 = vmul.f32 %v235, %v291
    %v297 = vlaneseq
    %v298 = vshrl.u32 %v297, 7
    %v299 = vsub.s32 1, %v298
    %v300 = vrot.slane %v256, %v299
    %v301 = vlaneseq
    %v302 = vshrl.u32 %v301, 7
    %v303 = vsub.s32 3, %v302
    %v304 = vrot.slane %v256, %v303
    %v307 = vlaneseq
    %v308 = vshrl.u32 %v307, 7
    %v309 = vsub.s32 1, %v308
    %v310 = vrot.slane %v300, %v309
    %v311 = vlaneseq
    %v312 = vshrl.u32 %v311, 7
    %v313 = vsub.s32 1, %v312
    %v314 = vrot.slane %v304, %v313
    %v315 = vadd.f32 %v292, %v310
    %v316 = vadd.f32 %v293, %v314
    %v317 = vadd.f32 %v294, %v310
    %v318 = vadd.f32 %v295, %v314
    %v319 = vmax.f32 %v315, 0.0
    %v320 = vmax.f32 %v316, 0.0
    %v321 = vmax.f32 %v317, 0.0
    %v322 = vmax.f32 %v318, 0.0
    %v323 = vld [vmem:[#allocation8] sm:$0xff]
    %v324 = vld [vmem:[#allocation8 + $0x8] sm:$0xff]
    %v325 = vpack.c.bf16 %v321, %v319
    %v326 = vpack.c.bf16 %v322, %v320
    %v327 = vld [vmem:[#allocation7] sm:$0xf]
    %v328 = vld [vmem:[#allocation7 + $0x4] sm:$0xf]
    %v329 = vld [vmem:[#allocation7 + $0x8] sm:$0xf]
    %v330 = vld [vmem:[#allocation7 + $0xc] sm:$0xf]
    %v331 = vld [vmem:[#allocation7 + $0x10] sm:$0xf]
    %v332 = vld [vmem:[#allocation7 + $0x14] sm:$0xf]
    %v333 = vld [vmem:[#allocation7 + $0x18] sm:$0xf]
    %v334 = vld [vmem:[#allocation7 + $0x1c] sm:$0xf]
    %v335 = vld [vmem:[#allocation7 + $0x20] sm:$0xf]
    %v336 = vld [vmem:[#allocation7 + $0x24] sm:$0xf]
    %v337 = vld [vmem:[#allocation7 + $0x28] sm:$0xf]
    %v338 = vld [vmem:[#allocation7 + $0x2c] sm:$0xf]
    %v339 = vld [vmem:[#allocation7 + $0x30] sm:$0xf]
    %v340 = vld [vmem:[#allocation7 + $0x34] sm:$0xf]
    %v341 = vld [vmem:[#allocation7 + $0x38] sm:$0xf]
    %v342 = vld [vmem:[#allocation7 + $0x3c] sm:$0xf]
    %v343 = vld [vmem:[#allocation7 + $0x40] sm:$0xf]
    %v344 = vld [vmem:[#allocation7 + $0x44] sm:$0xf]
    %v345 = vld [vmem:[#allocation7 + $0x48] sm:$0xf]
    %v346 = vld [vmem:[#allocation7 + $0x4c] sm:$0xf]
    %v347 = vld [vmem:[#allocation7 + $0x50] sm:$0xf]
    %v348 = vld [vmem:[#allocation7 + $0x54] sm:$0xf]
    %v349 = vld [vmem:[#allocation7 + $0x58] sm:$0xf]
    %v350 = vld [vmem:[#allocation7 + $0x5c] sm:$0xf]
    %v351 = vld [vmem:[#allocation7 + $0x60] sm:$0xf]
    %v352 = vld [vmem:[#allocation7 + $0x64] sm:$0xf]
    %v353 = vld [vmem:[#allocation7 + $0x68] sm:$0xf]
    %v354 = vld [vmem:[#allocation7 + $0x6c] sm:$0xf]
    %v355 = vld [vmem:[#allocation7 + $0x70] sm:$0xf]
    %v356 = vld [vmem:[#allocation7 + $0x74] sm:$0xf]
    %v357 = vld [vmem:[#allocation7 + $0x78] sm:$0xf]
    %v358 = vld [vmem:[#allocation7 + $0x7c] sm:$0xf]
    %v391 = vunpack.c.l.b16 %v327
    %v392 = vunpack.c.l.b16 %v328
    %v393 = vunpack.c.l.b16 %v329
    %v394 = vunpack.c.l.b16 %v330
    %v395 = vunpack.c.l.b16 %v331
    %v396 = vunpack.c.l.b16 %v332
    %v397 = vunpack.c.l.b16 %v333
    %v398 = vunpack.c.l.b16 %v334
    %v399 = vunpack.c.l.b16 %v335
    %v400 = vunpack.c.l.b16 %v336
    %v401 = vunpack.c.l.b16 %v337
    %v402 = vunpack.c.l.b16 %v338
    %v403 = vunpack.c.l.b16 %v339
    %v404 = vunpack.c.l.b16 %v340
    %v405 = vunpack.c.l.b16 %v341
    %v406 = vunpack.c.l.b16 %v342
    %v407 = vunpack.c.l.b16 %v343
    %v408 = vunpack.c.l.b16 %v344
    %v409 = vunpack.c.l.b16 %v345
    %v410 = vunpack.c.l.b16 %v346
    %v411 = vunpack.c.l.b16 %v347
    %v412 = vunpack.c.l.b16 %v348
    %v413 = vunpack.c.l.b16 %v349
    %v414 = vunpack.c.l.b16 %v350
    %v415 = vunpack.c.l.b16 %v351
    %v416 = vunpack.c.l.b16 %v352
    %v417 = vunpack.c.l.b16 %v353
    %v418 = vunpack.c.l.b16 %v354
    %v419 = vunpack.c.l.b16 %v355
    %v420 = vunpack.c.l.b16 %v356
    %v421 = vunpack.c.l.b16 %v357
    %v422 = vunpack.c.l.b16 %v358
    %v423 = vpack.c.b16 %v392, %v391
    %v424 = vpack.c.b16 %v394, %v393
    %v425 = vpack.c.b16 %v396, %v395
    %v426 = vpack.c.b16 %v398, %v397
    %v427 = vpack.c.b16 %v400, %v399
    %v428 = vpack.c.b16 %v402, %v401
    %v429 = vpack.c.b16 %v404, %v403
    %v430 = vpack.c.b16 %v406, %v405
    %v431 = vpack.c.b16 %v408, %v407
    %v432 = vpack.c.b16 %v410, %v409
    %v433 = vpack.c.b16 %v412, %v411
    %v434 = vpack.c.b16 %v414, %v413
    %v435 = vpack.c.b16 %v416, %v415
    %v436 = vpack.c.b16 %v418, %v417
    %v437 = vpack.c.b16 %v420, %v419
    %v438 = vpack.c.b16 %v422, %v421
    %455 = vmatprep.subr.bf16.mxu0 0
    %456 = vmatpush1.bf16.msra.mxu0 %v423
    %457 = vmatprep.subr.bf16.mxu0 0
    %458 = vmatpush1.bf16.msra.mxu0 %v424
    %459 = vmatprep.subr.bf16.mxu0 0
    %460 = vmatpush1.bf16.msra.mxu0 %v425
    %461 = vmatprep.subr.bf16.mxu0 0
    %462 = vmatpush1.bf16.msra.mxu0 %v426
    %463 = vmatprep.subr.bf16.mxu0 0
    %464 = vmatpush1.bf16.msra.mxu0 %v427
    %465 = vmatprep.subr.bf16.mxu0 0
    %466 = vmatpush1.bf16.msra.mxu0 %v428
    %467 = vmatprep.subr.bf16.mxu0 0
    %468 = vmatpush1.bf16.msra.mxu0 %v429
    %469 = vmatprep.subr.bf16.mxu0 0
    %470 = vmatpush1.bf16.msra.mxu0 %v430
    %471 = vmatprep.subr.bf16.mxu0 0
    %472 = vmatpush1.bf16.msra.mxu0 %v431
    %473 = vmatprep.subr.bf16.mxu0 0
    %474 = vmatpush1.bf16.msra.mxu0 %v432
    %475 = vmatprep.subr.bf16.mxu0 0
    %476 = vmatpush1.bf16.msra.mxu0 %v433
    %477 = vmatprep.subr.bf16.mxu0 0
    %478 = vmatpush1.bf16.msra.mxu0 %v434
    %479 = vmatprep.subr.bf16.mxu0 0
    %480 = vmatpush1.bf16.msra.mxu0 %v435
    %481 = vmatprep.subr.bf16.mxu0 0
    %482 = vmatpush1.bf16.msra.mxu0 %v436
    %483 = vmatprep.subr.bf16.mxu0 0
    %484 = vmatpush1.bf16.msra.mxu0 %v437
    %485 = vmatprep.subr.bf16.mxu0 0
    %486 = vmatpush1.bf16.msra.mxu0 %v438
    %487 = vmatprep.mubr.bf16.mxu0 %v326
    %488 = vmatmul.mubr.bf16.gmra.mrb[0].mxu0 %v325
    %v489 = vpop.f32.mrb[0].mxu0
    %v490 = vadd.f32 0.0, %v489
    %v491 = vpop.f32.mrb[0].mxu0
    %v492 = vpop.f32.mrb[0].mxu0
    %v493 = vadd.f32 0.0, %v492
    %v494 = vpop.f32.mrb[0].mxu0
    %495 = vdwg.mxu0
    %v496 = vadd.f32 %v323, %v490
    %v497 = vadd.f32 %v324, %v493
    %498 = vst [vmem:[#allocation8] sm:$0xff] %v496
    %499 = vst [vmem:[#allocation8 + $0x8] sm:$0xff] %v497
    // Predicated region
    $region38: #{tpu_custom_call.1} parent=1 // pred_check
      %p500 = pneg %p63
    $region39: #{tpu_custom_call.1} parent=1 // pred_check_branch
      %502 = sbr.rel (%p500) target = $region41
    $region40: #{tpu_custom_call.1} parent=1 // pred_region
      %v503 = vld [vmem:[#allocation8] sm:$0xff]
      %v504 = vld [vmem:[#allocation8 + $0x8] sm:$0xff]
      %v505 = vld [vmem:[%s4] sm:$0x1]
      %v507 = vlaneseq
      %v508 = vshrl.u32 %v507, 7
      %v509 = vsub.s32 0, %v508
      %v510 = vrot.slane %v505, %v509
      %v512 = vadd.f32 %v503, %v510
      %v513 = vadd.f32 %v504, %v510
      %514 = vst [vmem:[#allocation8] sm:$0xff] %v512
      %515 = vst [vmem:[#allocation8 + $0x8] sm:$0xff] %v513
    $region41: #{tpu_custom_call.1} parent=1 // pred_fallthru
      _
    // Predicated region
    $region42: #{tpu_custom_call.1} parent=1 // pred_check
      _
    $region43: #{tpu_custom_call.1} parent=1 // pred_check_branch
      %517 = sbr.rel (0) target = $region45
    $region44: #{tpu_custom_call.1} parent=1 // pred_region
      %s519 = ssub.s32 256, 256
      %520 = vsyncadd [#allocation4], %s519
      %s521 = sshll.u32 [#allocation8], 4
      %s522 = int_to_ptr.vmem [resolvable:$true] %s521
      %527 = dma.vmem_to_hbm [thread:$0]  %s522, 256, %s5, [#allocation4], 128, 128, 8
    $region45: #{tpu_custom_call.1} parent=1 // pred_fallthru
      _
    // Predicated region
    $region46: #{tpu_custom_call.1} parent=1 // pred_check
      _
    $region47: #{tpu_custom_call.1} parent=1 // pred_check_branch
      %529 = sbr.rel (0) target = $region49
    $region48: #{tpu_custom_call.1} parent=1 // pred_region
      %530 = dma.done [#allocation4], 256
    $region49: #{tpu_custom_call.1} parent=1 // pred_fallthru
      _
    %531 = vsyncpa [#allocation3], 1
    %532 = vsyncpa [#allocation6], 1
    %533 = vsyncpa [#allocation4], 1

</llo_original>
